<compile_context>
chip_gen: v5e
topology: v5e:2x2
jax: 0.10.0
libtpu: 0.0.40
codegen_flags: <defaults>
</compile_context>

<pallas_src>
import functools

import jax
import jax.numpy as jnp
from jax import lax
from jax.experimental import pallas as pl
from jax.experimental.pallas import tpu as pltpu

FC1, FC2, FC3 = 64, 128, 68
H_PAD = 128  # lane-dense hidden width


def _cdiv(a, b):
    return -(-a // b)


def _round_up(x, m):
    return ((x + m - 1) // m) * m


def _critic_kernel(x_ref,
                   w1_ref, b1_ref,
                   w2_ref, b2_ref,
                   w3_ref, b3_ref,
                   wv_ref, bv_ref,
                   o_ref,
                   *, chunk):
    """One (TM, D) batch tile -> one (1, TM) lane-dense row of values."""
    tm = x_ref.shape[0]
    n_chunks = tm // chunk
    cdt = w1_ref.dtype  # matmul operand dtype (f32 or bf16); accumulation is f32

    # Fully unrolled chunk loop with static, 128-aligned offsets: per-chunk
    # intermediates ((chunk, 128) f32) stay in vregs rather than materializing
    # three (TM, 128) arrays in VMEM.
    for c in range(n_chunks):
        start = c * chunk
        x = x_ref[pl.ds(start, chunk), :]

        h = jnp.dot(x.astype(cdt), w1_ref[...],
                    preferred_element_type=jnp.float32) + b1_ref[...]
        h = jnp.maximum(h, 0.0)

        h = jnp.dot(h.astype(cdt), w2_ref[...],
                    preferred_element_type=jnp.float32) + b2_ref[...]
        h = jnp.maximum(h, 0.0)

        h = jnp.dot(h.astype(cdt), w3_ref[...],
                    preferred_element_type=jnp.float32) + b3_ref[...]
        h = jnp.maximum(h, 0.0)

        # Value head: contract wv (8, 128) with h (chunk, 128) over the 128
        # lane axis (trans-B matmul) -> (8, chunk); row 0 carries the result.
        # This emits the (1, chunk) row lane-dense, so the (1, TM) output
        # block is written with full-width unmasked stores.
        head = lax.dot_general(
            wv_ref[...], h.astype(cdt),
            dimension_numbers=(((1,), (1,)), ((), ())),
            preferred_element_type=jnp.float32)
        v_row = head[0:1, :] + bv_ref[...]
        o_ref[:, pl.ds(start, chunk)] = v_row.astype(o_ref.dtype)


def _choose_tiles(batch, max_block_rows, target_steps):
    """Pick (TM, n_steps): TM multiple of 128 derived from a target step count
    (avoids a nearly-empty last tile), capped for v5e's 16 MiB scoped VMEM,
    with a preference for an even step count (v7x megacore balance)."""
    max_tm = max(128, _round_up(max_block_rows, 128))
    tm = min(max_tm, _round_up(_cdiv(max(batch, 1), target_steps), 128))
    n = _cdiv(max(batch, 1), tm)
    if n > 1 and n % 2 == 1:
        tm = min(max_tm, _round_up(_cdiv(batch, n + 1), 128))
    n = _cdiv(max(batch, 1), tm)
    return tm, n


def critic_forward(state, params, *, max_block_rows=2048, target_steps=2):
    """state: (B, input_dim) f32. params: padded kernel params from prepare_params()."""
    B, D = state.shape
    TM, n_steps = _choose_tiles(B, max_block_rows, target_steps)
    Bp = n_steps * TM
    if Bp != B:
        state = jnp.pad(state, ((0, Bp - B), (0, 0)))

    chunk = 256 if TM % 256 == 0 else 128

    w1, b1 = params["w1"], params["b1"]
    w2, b2 = params["w2"], params["b2"]
    w3, b3 = params["w3"], params["b3"]
    wv, bv = params["wv"], params["bv"]

    def resident(arr):
        # Full-array block, same block index every grid step -> VMEM-resident.
        return pl.BlockSpec(arr.shape, lambda i: (0, 0))

    out = pl.pallas_call(
        functools.partial(_critic_kernel, chunk=chunk),
        out_shape=jax.ShapeDtypeStruct((1, Bp), jnp.float32),
        grid=(n_steps,),
        in_specs=[
            pl.BlockSpec((TM, D), lambda i: (i, 0)),   # state tile (pipelined)
            resident(w1), resident(b1),
            resident(w2), resident(b2),
            resident(w3), resident(b3),
            resident(wv), resident(bv),
        ],
        # Lane-dense output: one (1, TM) row slab per grid step.
        out_specs=pl.BlockSpec((1, TM), lambda i: (0, i)),
        compiler_params=pltpu.CompilerParams(
            dimension_semantics=("parallel",)),
    )(state, w1, b1, w2, b2, w3, b3, wv, bv)

    return out[0, :B].reshape(B, 1)


def init_params(key, input_dim, fc1=FC1, fc2=FC2, fc3=FC3):
    """Logical (unpadded) params mimicking PyTorch Linear's U(-1/sqrt(fan_in), ...).

    Weights stored as (in, out) — already transposed relative to PyTorch.
    """
    dims = [(input_dim, fc1), (fc1, fc2), (fc2, fc3), (fc3, 1)]
    names = ["1", "2", "3", "v"]
    params = {}
    for (fan_in, fan_out), name in zip(dims, names):
        key, kw, kb = jax.random.split(key, 3)
        bound = 1.0 / jnp.sqrt(jnp.float32(fan_in))
        params[f"w{name}"] = jax.random.uniform(
            kw, (fan_in, fan_out), jnp.float32, minval=-bound, maxval=bound)
        params[f"b{name}"] = jax.random.uniform(
            kb, (fan_out,), jnp.float32, minval=-bound, maxval=bound)
    return params


def prepare_params(p, compute_dtype=jnp.float32):
    """Zero-pad hidden dims to 128 lanes for the kernel.

    Weights may be cast to bf16 (v6e/v7x MXU-native) via compute_dtype; biases
    stay f32 since bias+ReLU run in f32 after the f32 MXU accumulation.
    """
    w1 = jnp.pad(p["w1"], ((0, 0), (0, H_PAD - FC1)))             # (in, 128)
    b1 = jnp.pad(p["b1"], (0, H_PAD - FC1)).reshape(1, H_PAD)     # (1, 128)

    w2 = jnp.pad(p["w2"], ((0, H_PAD - FC1), (0, 0)))             # (128, 128)
    b2 = p["b2"].reshape(1, FC2)                                  # (1, 128)

    w3 = jnp.pad(p["w3"], ((0, 0), (0, H_PAD - FC3)))             # (128, 128)
    b3 = jnp.pad(p["b3"], (0, H_PAD - FC3)).reshape(1, H_PAD)     # (1, 128)

    # Value head as an (8, 128) block (rows 1..7 zero): feeds the trans-B
    # matmul in the kernel that produces the lane-dense (1, chunk) row.
    wv_row = jnp.pad(p["wv"][:, 0], (0, H_PAD - FC3)).reshape(1, H_PAD)
    wv = jnp.pad(wv_row, ((0, 7), (0, 0)))                        # (8, 128)
    bv = p["bv"].reshape(1, 1)                                    # (1, 1)

    cd = compute_dtype
    return {"w1": w1.astype(cd), "b1": b1,
            "w2": w2.astype(cd), "b2": b2,
            "w3": w3.astype(cd), "b3": b3,
            "wv": wv.astype(cd), "bv": bv}


def critic_forward_ref(state, p):
    h = jnp.maximum(state @ p["w1"] + p["b1"], 0.0)
    h = jnp.maximum(h @ p["w2"] + p["b2"], 0.0)
    h = jnp.maximum(h @ p["w3"] + p["b3"], 0.0)
    return h @ p["wv"] + p["bv"]


if __name__ == "__main__":
    key = jax.random.PRNGKey(0)
    k_param, k_state = jax.random.split(key)

    batch = 4
    input_dim = 8  # LunarLander-v2 observation size

    logical = init_params(k_param, input_dim)
    kernel_params = prepare_params(logical)  # f32 compute -> 1e-4 parity w/ ref
    state = jax.random.normal(k_state, (batch, input_dim), jnp.float32)

    v = critic_forward(state, kernel_params)
    v = jax.block_until_ready(v)

    v_ref = critic_forward_ref(state, logical)
    assert v.shape == (batch, 1), v.shape
    assert jnp.allclose(v, v_ref, atol=1e-4, rtol=1e-4), (v, v_ref)

    print("KERNEL_OK")
</pallas_src>

<mosaic_0001>
module attributes {stable_mosaic.version = 11 : i64} {
  func.func @_critic_kernel(%arg0: i32, %arg1: memref<128x8xf32, #tpu.memory_space<vmem>>, %arg2: memref<8x128xf32, #tpu.memory_space<vmem>>, %arg3: memref<1x128xf32, #tpu.memory_space<vmem>>, %arg4: memref<128x128xf32, #tpu.memory_space<vmem>>, %arg5: memref<1x128xf32, #tpu.memory_space<vmem>>, %arg6: memref<128x128xf32, #tpu.memory_space<vmem>>, %arg7: memref<1x128xf32, #tpu.memory_space<vmem>>, %arg8: memref<8x128xf32, #tpu.memory_space<vmem>>, %arg9: memref<1x1xf32, #tpu.memory_space<vmem>>, %arg10: memref<1x128xf32, #tpu.memory_space<vmem>>) attributes {dimension_semantics = [#tpu.dimension_semantics<parallel>], iteration_bounds = array<i64: 1>, scalar_prefetch = 0 : i64, scratch_operands = 0 : i64, tpu.core_type = #tpu.core_type<tc>, window_params = [{transform_indices = @transform_0, window_bounds = array<i64: 128, 8>}, {pipeline_mode = #tpu.pipeline_mode<synchronous>, transform_indices = @transform_1, window_bounds = array<i64: 8, 128>}, {pipeline_mode = #tpu.pipeline_mode<synchronous>, transform_indices = @transform_2, window_bounds = array<i64: 1, 128>}, {pipeline_mode = #tpu.pipeline_mode<synchronous>, transform_indices = @transform_3, window_bounds = array<i64: 128, 128>}, {pipeline_mode = #tpu.pipeline_mode<synchronous>, transform_indices = @transform_4, window_bounds = array<i64: 1, 128>}, {pipeline_mode = #tpu.pipeline_mode<synchronous>, transform_indices = @transform_5, window_bounds = array<i64: 128, 128>}, {pipeline_mode = #tpu.pipeline_mode<synchronous>, transform_indices = @transform_6, window_bounds = array<i64: 1, 128>}, {pipeline_mode = #tpu.pipeline_mode<synchronous>, transform_indices = @transform_7, window_bounds = array<i64: 8, 128>}, {pipeline_mode = #tpu.pipeline_mode<synchronous>, transform_indices = @transform_8, window_bounds = array<i64: 1, 1>}, {transform_indices = @transform_9, window_bounds = array<i64: 1, 128>}]} {
    %c0 = arith.constant 0 : index
    %c0_0 = arith.constant 0 : index
    %0 = vector.load %arg1[%c0, %c0_0] : memref<128x8xf32, #tpu.memory_space<vmem>>, vector<128x8xf32>
    %c0_1 = arith.constant 0 : index
    %c0_2 = arith.constant 0 : index
    %1 = vector.load %arg2[%c0_1, %c0_2] : memref<8x128xf32, #tpu.memory_space<vmem>>, vector<8x128xf32>
    %cst = arith.constant dense<0.000000e+00> : vector<128x128xf32>
    %2 = tpu.matmul %0, %1, %cst {dimension_numbers = #tpu.dot_dimension_numbers<[1], [0], [0], [1], [0, 0, 1, 1], [], []>} : vector<128x8xf32>, vector<8x128xf32>, vector<128x128xf32> -> vector<128x128xf32>
    %c0_3 = arith.constant 0 : index
    %c0_4 = arith.constant 0 : index
    %3 = vector.load %arg3[%c0_3, %c0_4] : memref<1x128xf32, #tpu.memory_space<vmem>>, vector<1x128xf32>
    %4 = vector.broadcast %3 : vector<1x128xf32> to vector<128x128xf32>
    %5 = arith.addf %2, %4 : vector<128x128xf32>
    %cst_5 = arith.constant 0.000000e+00 : f32
    %6 = vector.broadcast %cst_5 : f32 to vector<128x128xf32>
    %7 = arith.maximumf %5, %6 : vector<128x128xf32>
    %c0_6 = arith.constant 0 : index
    %c0_7 = arith.constant 0 : index
    %8 = vector.load %arg4[%c0_6, %c0_7] : memref<128x128xf32, #tpu.memory_space<vmem>>, vector<128x128xf32>
    %cst_8 = arith.constant dense<0.000000e+00> : vector<128x128xf32>
    %9 = tpu.matmul %7, %8, %cst_8 {dimension_numbers = #tpu.dot_dimension_numbers<[1], [0], [0], [1], [0, 0, 1, 1], [], []>} : vector<128x128xf32>, vector<128x128xf32>, vector<128x128xf32> -> vector<128x128xf32>
    %c0_9 = arith.constant 0 : index
    %c0_10 = arith.constant 0 : index
    %10 = vector.load %arg5[%c0_9, %c0_10] : memref<1x128xf32, #tpu.memory_space<vmem>>, vector<1x128xf32>
    %11 = vector.broadcast %10 : vector<1x128xf32> to vector<128x128xf32>
    %12 = arith.addf %9, %11 : vector<128x128xf32>
    %cst_11 = arith.constant 0.000000e+00 : f32
    %13 = vector.broadcast %cst_11 : f32 to vector<128x128xf32>
    %14 = arith.maximumf %12, %13 : vector<128x128xf32>
    %c0_12 = arith.constant 0 : index
    %c0_13 = arith.constant 0 : index
    %15 = vector.load %arg6[%c0_12, %c0_13] : memref<128x128xf32, #tpu.memory_space<vmem>>, vector<128x128xf32>
    %cst_14 = arith.constant dense<0.000000e+00> : vector<128x128xf32>
    %16 = tpu.matmul %14, %15, %cst_14 {dimension_numbers = #tpu.dot_dimension_numbers<[1], [0], [0], [1], [0, 0, 1, 1], [], []>} : vector<128x128xf32>, vector<128x128xf32>, vector<128x128xf32> -> vector<128x128xf32>
    %c0_15 = arith.constant 0 : index
    %c0_16 = arith.constant 0 : index
    %17 = vector.load %arg7[%c0_15, %c0_16] : memref<1x128xf32, #tpu.memory_space<vmem>>, vector<1x128xf32>
    %18 = vector.broadcast %17 : vector<1x128xf32> to vector<128x128xf32>
    %19 = arith.addf %16, %18 : vector<128x128xf32>
    %cst_17 = arith.constant 0.000000e+00 : f32
    %20 = vector.broadcast %cst_17 : f32 to vector<128x128xf32>
    %21 = arith.maximumf %19, %20 : vector<128x128xf32>
    %c0_18 = arith.constant 0 : index
    %c0_19 = arith.constant 0 : index
    %22 = vector.load %arg8[%c0_18, %c0_19] : memref<8x128xf32, #tpu.memory_space<vmem>>, vector<8x128xf32>
    %cst_20 = arith.constant dense<0.000000e+00> : vector<8x128xf32>
    %23 = tpu.matmul %22, %21, %cst_20 {dimension_numbers = #tpu.dot_dimension_numbers<[1], [1], [0], [0], [0, 0, 1, 0], [], []>} : vector<8x128xf32>, vector<128x128xf32>, vector<8x128xf32> -> vector<8x128xf32>
    %24 = vector.extract_strided_slice %23 {offsets = [0, 0], sizes = [1, 128], strides = [1, 1]} : vector<8x128xf32> to vector<1x128xf32>
    %c0_21 = arith.constant 0 : index
    %c0_22 = arith.constant 0 : index
    %25 = vector.load %arg9[%c0_21, %c0_22] : memref<1x1xf32, #tpu.memory_space<vmem>>, vector<1x1xf32>
    %26 = vector.broadcast %25 : vector<1x1xf32> to vector<1x128xf32>
    %27 = arith.addf %24, %26 : vector<1x128xf32>
    %c0_23 = arith.constant 0 : index
    %c0_24 = arith.constant 0 : index
    %28 = vector.load %arg10[%c0_23, %c0_24] : memref<1x128xf32, #tpu.memory_space<vmem>>, vector<1x128xf32>
    tpu.vector_store %arg10[%c0_23, %c0_24], %27 {strides = array<i32>} : memref<1x128xf32, #tpu.memory_space<vmem>>, vector<1x128xf32>,
    return
  }
  func.func @transform_0(%arg0: i32) -> (i32, i32) {
    %c0_i32 = arith.constant 0 : i32
    %c0_i32_0 = arith.constant 0 : i32
    return %arg0, %c0_i32 : i32, i32
  }
  func.func @transform_1(%arg0: i32) -> (i32, i32) {
    %c0_i32 = arith.constant 0 : i32
    %c0_i32_0 = arith.constant 0 : i32
    %c0_i32_1 = arith.constant 0 : i32
    return %c0_i32, %c0_i32_0 : i32, i32
  }
  func.func @transform_2(%arg0: i32) -> (i32, i32) {
    %c0_i32 = arith.constant 0 : i32
    %c0_i32_0 = arith.constant 0 : i32
    %c0_i32_1 = arith.constant 0 : i32
    return %c0_i32, %c0_i32_0 : i32, i32
  }
  func.func @transform_3(%arg0: i32) -> (i32, i32) {
    %c0_i32 = arith.constant 0 : i32
    %c0_i32_0 = arith.constant 0 : i32
    %c0_i32_1 = arith.constant 0 : i32
    return %c0_i32, %c0_i32_0 : i32, i32
  }
  func.func @transform_4(%arg0: i32) -> (i32, i32) {
    %c0_i32 = arith.constant 0 : i32
    %c0_i32_0 = arith.constant 0 : i32
    %c0_i32_1 = arith.constant 0 : i32
    return %c0_i32, %c0_i32_0 : i32, i32
  }
  func.func @transform_5(%arg0: i32) -> (i32, i32) {
    %c0_i32 = arith.constant 0 : i32
    %c0_i32_0 = arith.constant 0 : i32
    %c0_i32_1 = arith.constant 0 : i32
    return %c0_i32, %c0_i32_0 : i32, i32
  }
  func.func @transform_6(%arg0: i32) -> (i32, i32) {
    %c0_i32 = arith.constant 0 : i32
    %c0_i32_0 = arith.constant 0 : i32
    %c0_i32_1 = arith.constant 0 : i32
    return %c0_i32, %c0_i32_0 : i32, i32
  }
  func.func @transform_7(%arg0: i32) -> (i32, i32) {
    %c0_i32 = arith.constant 0 : i32
    %c0_i32_0 = arith.constant 0 : i32
    %c0_i32_1 = arith.constant 0 : i32
    return %c0_i32, %c0_i32_0 : i32, i32
  }
  func.func @transform_8(%arg0: i32) -> (i32, i32) {
    %c0_i32 = arith.constant 0 : i32
    %c0_i32_0 = arith.constant 0 : i32
    %c0_i32_1 = arith.constant 0 : i32
    return %c0_i32, %c0_i32_0 : i32, i32
  }
  func.func @transform_9(%arg0: i32) -> (i32, i32) {
    %c0_i32 = arith.constant 0 : i32
    %c0_i32_0 = arith.constant 0 : i32
    return %c0_i32, %arg0 : i32, i32
  }
}

</mosaic_0001>

<llo_original>
// kernel: tpu_custom_call.1
$region0: #{tpu_custom_call.1}
  #allocation0 [shape = 'u32[]', space=smem, size = 0x4, offset = 0x4, fixed_abs, tag = 'smem constant byte address 0x4 - core index']
  #allocation1 [shape = 'u32[72,128]{1,0:T(1,128)}', space=vmem, size = 0x9000, scoped, tag = 'internal scratch']
  #allocation2 [shape = 'f32[1,1]{1,0:T(1,128)S(1)}', space=vmem, size = 0x200, scoped, tag = 'scoped memory for tpu_custom_call.1']
  %s0 = inlined_call_operand.vmem [shape: f32[128,8], index: 0, kind: input, shape index: {}]
  %s1 = inlined_call_operand.vmem [shape: f32[8,128], index: 1, kind: input, shape index: {}]
  %s2 = inlined_call_operand.vmem [shape: f32[1,128], index: 2, kind: input, shape index: {}]
  %s3 = inlined_call_operand.vmem [shape: f32[128,128], index: 3, kind: input, shape index: {}]
  %s4 = inlined_call_operand.vmem [shape: f32[1,128], index: 4, kind: input, shape index: {}]
  %s5 = inlined_call_operand.hbm [shape: f32[128,128], index: 5, kind: input, shape index: {}]
  %s6 = inlined_call_operand.vmem [shape: f32[1,128], index: 6, kind: input, shape index: {}]
  %s7 = inlined_call_operand.hbm [shape: f32[8,128], index: 7, kind: input, shape index: {}]
  %s8 = inlined_call_operand.<no memory space> [shape: f32[1,1], index: 8, kind: input, shape index: {}]
  %s9 = inlined_call_operand.hbm [shape: f32[1,128], index: 9, kind: output, shape index: {}]
  %s10 = sld [smem:[#allocation0]]
  $region54: #{tpu_custom_call.1} parent=0
    _
  %s12 = ssub.s32 1, %s10
  %s13 = scalar_select 0, %s12, %s10
  %v14 = vstv %s8
  %15 = vst [vmem:[#allocation2] sm:$0x1] %v14
  $region1: #{tpu_custom_call.1} parent=0
    #allocation3 [shape = 'u8[65536]{0}', space=vmem, size = 0x10000, scoped, tag = 'input window, operand 5, single buffered']
    #allocation4 [shape = 's32[1]{0}', space=sflag, size = 0x4, scoped, tag = 'scoped memory for tpu_custom_call.1']
    #allocation5 [shape = 's32[1]{0}', space=sflag, size = 0x4, scoped, tag = 'scoped memory for tpu_custom_call.1']
    #allocation6 [shape = 'u8[4096]{0}', space=vmem, size = 0x1000, scoped, tag = 'input window, operand 7, single buffered']
    #allocation7 [shape = 's32[1]{0}', space=sflag, size = 0x4, scoped, tag = 'scoped memory for tpu_custom_call.1']
    #allocation8 [shape = 'u8[512]{0}', space=vmem, size = 0x400, scoped, tag = 'output window, operand 0, single buffered']
    %16 = vsyncpa [#allocation4], 0
    %17 = vsyncpa [#allocation7], 0
    %18 = vsyncpa [#allocation5], 0
    // Predicated region
    $region2: #{tpu_custom_call.1} parent=1 // pred_check
      _
    $region3: #{tpu_custom_call.1} parent=1 // pred_check_branch
      %20 = sbr.rel (0) target = $region5
    $region4: #{tpu_custom_call.1} parent=1 // pred_region
      _
    $region5: #{tpu_custom_call.1} parent=1 // pred_fallthru
      _
    // Predicated region
    $region6: #{tpu_custom_call.1} parent=1 // pred_check
      _
    $region7: #{tpu_custom_call.1} parent=1 // pred_check_branch
      %22 = sbr.rel (0) target = $region9
    $region8: #{tpu_custom_call.1} parent=1 // pred_region
      _
    $region9: #{tpu_custom_call.1} parent=1 // pred_fallthru
      _
    // Predicated region
    $region10: #{tpu_custom_call.1} parent=1 // pred_check
      _
    $region11: #{tpu_custom_call.1} parent=1 // pred_check_branch
      %24 = sbr.rel (0) target = $region13
    $region12: #{tpu_custom_call.1} parent=1 // pred_region
      _
    $region13: #{tpu_custom_call.1} parent=1 // pred_fallthru
      _
    // Predicated region
    $region14: #{tpu_custom_call.1} parent=1 // pred_check
      _
    $region15: #{tpu_custom_call.1} parent=1 // pred_check_branch
      %26 = sbr.rel (0) target = $region17
    $region16: #{tpu_custom_call.1} parent=1 // pred_region
      _
    $region17: #{tpu_custom_call.1} parent=1 // pred_fallthru
      _
    // Predicated region
    $region18: #{tpu_custom_call.1} parent=1 // pred_check
      _
    $region19: #{tpu_custom_call.1} parent=1 // pred_check_branch
      %28 = sbr.rel (0) target = $region21
    $region20: #{tpu_custom_call.1} parent=1 // pred_region
      _
    $region21: #{tpu_custom_call.1} parent=1 // pred_fallthru
      _
    // Predicated region
    $region22: #{tpu_custom_call.1} parent=1 // pred_check
      _
    $region23: #{tpu_custom_call.1} parent=1 // pred_check_branch
      %30 = sbr.rel (0) target = $region25
    $region24: #{tpu_custom_call.1} parent=1 // pred_region
      %32 = vsyncadd [#allocation4], 0
      %s33 = sshll.u32 %s5, 4
      %s34 = int_to_ptr.hbm [resolvable:$true] %s33
      %s35 = sshll.u32 [#allocation3], 4
      %s36 = int_to_ptr.vmem [resolvable:$true] %s35
      %41 = dma.hbm_to_vmem [thread:$0]  %s34, 2048, %s36, [#allocation4], 128, 128, 8
    $region25: #{tpu_custom_call.1} parent=1 // pred_fallthru
      _
    // Predicated region
    $region26: #{tpu_custom_call.1} parent=1 // pred_check
      _
    $region27: #{tpu_custom_call.1} parent=1 // pred_check_branch
      %43 = sbr.rel (0) target = $region29
    $region28: #{tpu_custom_call.1} parent=1 // pred_region
      _
    $region29: #{tpu_custom_call.1} parent=1 // pred_fallthru
      _
    // Predicated region
    $region30: #{tpu_custom_call.1} parent=1 // pred_check
      _
    $region31: #{tpu_custom_call.1} parent=1 // pred_check_branch
      %45 = sbr.rel (0) target = $region33
    $region32: #{tpu_custom_call.1} parent=1 // pred_region
      %47 = vsyncadd [#allocation7], 0
      %s49 = sshll.u32 %s7, 4
      %s50 = int_to_ptr.hbm [resolvable:$true] %s49
      %s51 = sshll.u32 [#allocation6], 4
      %s52 = int_to_ptr.vmem [resolvable:$true] %s51
      %54 = dma.hbm_to_vmem [thread:$0]  %s50, 128, %s52, [#allocation7]
    $region33: #{tpu_custom_call.1} parent=1 // pred_fallthru
      _
    // Predicated region
    $region34: #{tpu_custom_call.1} parent=1 // pred_check
      _
    $region35: #{tpu_custom_call.1} parent=1 // pred_check_branch
      %56 = sbr.rel (0) target = $region37
    $region36: #{tpu_custom_call.1} parent=1 // pred_region
      _
    $region37: #{tpu_custom_call.1} parent=1 // pred_fallthru
      _
    // Predicated region
    $region38: #{tpu_custom_call.1} parent=1 // pred_check
      _
    $region39: #{tpu_custom_call.1} parent=1 // pred_check_branch
      %58 = sbr.rel (0) target = $region41
    $region40: #{tpu_custom_call.1} parent=1 // pred_region
      %60 = dma.done [#allocation4], 2048
    $region41: #{tpu_custom_call.1} parent=1 // pred_fallthru
      _
    // Predicated region
    $region42: #{tpu_custom_call.1} parent=1 // pred_check
      _
    $region43: #{tpu_custom_call.1} parent=1 // pred_check_branch
      %62 = sbr.rel (0) target = $region45
    $region44: #{tpu_custom_call.1} parent=1 // pred_region
      %64 = dma.done [#allocation7], 128
    $region45: #{tpu_custom_call.1} parent=1 // pred_fallthru
      _
    %v65 = vld [vmem:[%s0] sm:$0xff]
    %v66 = vld [vmem:[%s0 + $0x8] sm:$0xff]
    %v67 = vld [vmem:[%s0 + $0x10] sm:$0xff]
    %v68 = vld [vmem:[%s0 + $0x18] sm:$0xff]
    %v69 = vld [vmem:[%s0 + $0x20] sm:$0xff]
    %v70 = vld [vmem:[%s0 + $0x28] sm:$0xff]
    %v71 = vld [vmem:[%s0 + $0x30] sm:$0xff]
    %v72 = vld [vmem:[%s0 + $0x38] sm:$0xff]
    %v73 = vld [vmem:[%s0 + $0x40] sm:$0xff]
    %v74 = vld [vmem:[%s0 + $0x48] sm:$0xff]
    %v75 = vld [vmem:[%s0 + $0x50] sm:$0xff]
    %v76 = vld [vmem:[%s0 + $0x58] sm:$0xff]
    %v77 = vld [vmem:[%s0 + $0x60] sm:$0xff]
    %v78 = vld [vmem:[%s0 + $0x68] sm:$0xff]
    %v79 = vld [vmem:[%s0 + $0x70] sm:$0xff]
    %v80 = vld [vmem:[%s0 + $0x78] sm:$0xff]
    %v81 = vld [vmem:[%s1] sm:$0xff]
    %v82 = vld [vmem:[%s2] sm:$0x1]
    %v84 = vperm.slane %v82, 0
    %vm86 = vcmask 64512
    %v88 = vsel %vm86, %v65, 0
    %v91 = vsel %vm86, %v66, 0
    %v94 = vsel %vm86, %v67, 0
    %v97 = vsel %vm86, %v68, 0
    %v100 = vsel %vm86, %v69, 0
    %v103 = vsel %vm86, %v70, 0
    %v106 = vsel %vm86, %v71, 0
    %v109 = vsel %vm86, %v72, 0
    %v112 = vsel %vm86, %v73, 0
    %v115 = vsel %vm86, %v74, 0
    %v118 = vsel %vm86, %v75, 0
    %v121 = vsel %vm86, %v76, 0
    %v124 = vsel %vm86, %v77, 0
    %v127 = vsel %vm86, %v78, 0
    %v130 = vsel %vm86, %v79, 0
    %v133 = vsel %vm86, %v80, 0
    %135 = vmatpush.msra.mxu0 0.0
    %136 = vmatpush.msra.mxu0 0.0
    %137 = vmatpush.msra.mxu0 0.0
    %138 = vmatpush.msra.mxu0 0.0
    %139 = vmatpush.msra.mxu0 0.0
    %140 = vmatpush.msra.mxu0 0.0
    %141 = vmatpush.msra.mxu0 0.0
    %142 = vmatpush.msra.mxu0 0.0
    %143 = vmatpush.msra.mxu0 0.0
    %144 = vmatpush.msra.mxu0 0.0
    %145 = vmatpush.msra.mxu0 0.0
    %146 = vmatpush.msra.mxu0 0.0
    %147 = vmatpush.msra.mxu0 0.0
    %148 = vmatpush.msra.mxu0 0.0
    %149 = vmatpush.msra.mxu0 0.0
    %150 = vmatpush.msra.mxu0 %v81
    %151 = vmatmul.f32.gmra.mxu0 %v88
    %v152 = vpop.f32.mrf.mxu0
    %v153 = vadd.f32 %v84, %v152
    %154 = vmatmul.f32.gmra.mxu0 %v91
    %v155 = vpop.f32.mrf.mxu0
    %v156 = vadd.f32 %v84, %v155
    %157 = vmatmul.f32.gmra.mxu0 %v94
    %v158 = vpop.f32.mrf.mxu0
    %v159 = vadd.f32 %v84, %v158
    %160 = vmatmul.f32.gmra.mxu0 %v97
    %v161 = vpop.f32.mrf.mxu0
    %v162 = vadd.f32 %v84, %v161
    %163 = vmatmul.f32.gmra.mxu0 %v100
    %v164 = vpop.f32.mrf.mxu0
    %v165 = vadd.f32 %v84, %v164
    %166 = vmatmul.f32.gmra.mxu0 %v103
    %v167 = vpop.f32.mrf.mxu0
    %v168 = vadd.f32 %v84, %v167
    %169 = vmatmul.f32.gmra.mxu0 %v106
    %v170 = vpop.f32.mrf.mxu0
    %v171 = vadd.f32 %v84, %v170
    %172 = vmatmul.f32.gmra.mxu0 %v109
    %v173 = vpop.f32.mrf.mxu0
    %v174 = vadd.f32 %v84, %v173
    %175 = vmatmul.f32.gmra.mxu0 %v112
    %v176 = vpop.f32.mrf.mxu0
    %v177 = vadd.f32 %v84, %v176
    %178 = vmatmul.f32.gmra.mxu0 %v115
    %v179 = vpop.f32.mrf.mxu0
    %v180 = vadd.f32 %v84, %v179
    %181 = vmatmul.f32.gmra.mxu0 %v118
    %v182 = vpop.f32.mrf.mxu0
    %v183 = vadd.f32 %v84, %v182
    %184 = vmatmul.f32.gmra.mxu0 %v121
    %v185 = vpop.f32.mrf.mxu0
    %v186 = vadd.f32 %v84, %v185
    %187 = vmatmul.f32.gmra.mxu0 %v124
    %v188 = vpop.f32.mrf.mxu0
    %v189 = vadd.f32 %v84, %v188
    %190 = vmatmul.f32.gmra.mxu0 %v127
    %v191 = vpop.f32.mrf.mxu0
    %v192 = vadd.f32 %v84, %v191
    %193 = vmatmul.f32.gmra.mxu0 %v130
    %v194 = vpop.f32.mrf.mxu0
    %v195 = vadd.f32 %v84, %v194
    %196 = vmatmul.f32.gmra.mxu0 %v133
    %v197 = vpop.f32.mrf.mxu0
    %v198 = vadd.f32 %v84, %v197
    %199 = vdwg.mxu0
    %v200 = vmax.f32 %v153, 0.0
    %v201 = vmax.f32 %v156, 0.0
    %v202 = vmax.f32 %v159, 0.0
    %v203 = vmax.f32 %v162, 0.0
    %v204 = vmax.f32 %v165, 0.0
    %v205 = vmax.f32 %v168, 0.0
    %v206 = vmax.f32 %v171, 0.0
    %v207 = vmax.f32 %v174, 0.0
    %v208 = vmax.f32 %v177, 0.0
    %v209 = vmax.f32 %v180, 0.0
    %v210 = vmax.f32 %v183, 0.0
    %v211 = vmax.f32 %v186, 0.0
    %v212 = vmax.f32 %v189, 0.0
    %v213 = vmax.f32 %v192, 0.0
    %v214 = vmax.f32 %v195, 0.0
    %v215 = vmax.f32 %v198, 0.0
    %v216 = vld [vmem:[%s3] sm:$0xff]
    %v217 = vld [vmem:[%s3 + $0x8] sm:$0xff]
    %v218 = vld [vmem:[%s3 + $0x10] sm:$0xff]
    %v219 = vld [vmem:[%s3 + $0x18] sm:$0xff]
    %v220 = vld [vmem:[%s3 + $0x20] sm:$0xff]
    %v221 = vld [vmem:[%s3 + $0x28] sm:$0xff]
    %v222 = vld [vmem:[%s3 + $0x30] sm:$0xff]
    %v223 = vld [vmem:[%s3 + $0x38] sm:$0xff]
    %v224 = vld [vmem:[%s3 + $0x40] sm:$0xff]
    %v225 = vld [vmem:[%s3 + $0x48] sm:$0xff]
    %v226 = vld [vmem:[%s3 + $0x50] sm:$0xff]
    %v227 = vld [vmem:[%s3 + $0x58] sm:$0xff]
    %v228 = vld [vmem:[%s3 + $0x60] sm:$0xff]
    %v229 = vld [vmem:[%s3 + $0x68] sm:$0xff]
    %v230 = vld [vmem:[%s3 + $0x70] sm:$0xff]
    %v231 = vld [vmem:[%s3 + $0x78] sm:$0xff]
    %v232 = vld [vmem:[%s4] sm:$0x1]
    %v234 = vperm.slane %v232, 0
    %236 = vmatpush.msra.mxu0 %v231
    %237 = vmatpush.msra.mxu0 %v230
    %238 = vmatpush.msra.mxu0 %v229
    %239 = vmatpush.msra.mxu0 %v228
    %240 = vmatpush.msra.mxu0 %v227
    %241 = vmatpush.msra.mxu0 %v226
    %242 = vmatpush.msra.mxu0 %v225
    %243 = vmatpush.msra.mxu0 %v224
    %244 = vmatpush.msra.mxu0 %v223
    %245 = vmatpush.msra.mxu0 %v222
    %246 = vmatpush.msra.mxu0 %v221
    %247 = vmatpush.msra.mxu0 %v220
    %248 = vmatpush.msra.mxu0 %v219
    %249 = vmatpush.msra.mxu0 %v218
    %250 = vmatpush.msra.mxu0 %v217
    %251 = vmatpush.msra.mxu0 %v216
    %252 = vmatmul.f32.gmra.mxu0 %v200
    %v253 = vpop.f32.mrf.mxu0
    %v254 = vadd.f32 %v234, %v253
    %255 = vmatmul.f32.gmra.mxu0 %v201
    %v256 = vpop.f32.mrf.mxu0
    %v257 = vadd.f32 %v234, %v256
    %258 = vmatmul.f32.gmra.mxu0 %v202
    %v259 = vpop.f32.mrf.mxu0
    %v260 = vadd.f32 %v234, %v259
    %261 = vmatmul.f32.gmra.mxu0 %v203
    %v262 = vpop.f32.mrf.mxu0
    %v263 = vadd.f32 %v234, %v262
    %264 = vmatmul.f32.gmra.mxu0 %v204
    %v265 = vpop.f32.mrf.mxu0
    %v266 = vadd.f32 %v234, %v265
    %267 = vmatmul.f32.gmra.mxu0 %v205
    %v268 = vpop.f32.mrf.mxu0
    %v269 = vadd.f32 %v234, %v268
    %270 = vmatmul.f32.gmra.mxu0 %v206
    %v271 = vpop.f32.mrf.mxu0
    %v272 = vadd.f32 %v234, %v271
    %273 = vmatmul.f32.gmra.mxu0 %v207
    %v274 = vpop.f32.mrf.mxu0
    %v275 = vadd.f32 %v234, %v274
    %276 = vmatmul.f32.gmra.mxu0 %v208
    %v277 = vpop.f32.mrf.mxu0
    %v278 = vadd.f32 %v234, %v277
    %279 = vmatmul.f32.gmra.mxu0 %v209
    %v280 = vpop.f32.mrf.mxu0
    %v281 = vadd.f32 %v234, %v280
    %282 = vmatmul.f32.gmra.mxu0 %v210
    %v283 = vpop.f32.mrf.mxu0
    %v284 = vadd.f32 %v234, %v283
    %285 = vmatmul.f32.gmra.mxu0 %v211
    %v286 = vpop.f32.mrf.mxu0
    %v287 = vadd.f32 %v234, %v286
    %288 = vmatmul.f32.gmra.mxu0 %v212
    %v289 = vpop.f32.mrf.mxu0
    %v290 = vadd.f32 %v234, %v289
    %291 = vmatmul.f32.gmra.mxu0 %v213
    %v292 = vpop.f32.mrf.mxu0
    %v293 = vadd.f32 %v234, %v292
    %294 = vmatmul.f32.gmra.mxu0 %v214
    %v295 = vpop.f32.mrf.mxu0
    %v296 = vadd.f32 %v234, %v295
    %297 = vmatmul.f32.gmra.mxu0 %v215
    %v298 = vpop.f32.mrf.mxu0
    %v299 = vadd.f32 %v234, %v298
    %300 = vdwg.mxu0
    %v301 = vmax.f32 %v254, 0.0
    %v302 = vmax.f32 %v257, 0.0
    %v303 = vmax.f32 %v260, 0.0
    %v304 = vmax.f32 %v263, 0.0
    %v305 = vmax.f32 %v266, 0.0
    %v306 = vmax.f32 %v269, 0.0
    %v307 = vmax.f32 %v272, 0.0
    %v308 = vmax.f32 %v275, 0.0
    %v309 = vmax.f32 %v278, 0.0
    %v310 = vmax.f32 %v281, 0.0
    %v311 = vmax.f32 %v284, 0.0
    %v312 = vmax.f32 %v287, 0.0
    %v313 = vmax.f32 %v290, 0.0
    %v314 = vmax.f32 %v293, 0.0
    %v315 = vmax.f32 %v296, 0.0
    %v316 = vmax.f32 %v299, 0.0
    %v317 = vld [vmem:[#allocation3] sm:$0xff]
    %v318 = vld [vmem:[#allocation3 + $0x8] sm:$0xff]
    %v319 = vld [vmem:[#allocation3 + $0x10] sm:$0xff]
    %v320 = vld [vmem:[#allocation3 + $0x18] sm:$0xff]
    %v321 = vld [vmem:[#allocation3 + $0x20] sm:$0xff]
    %v322 = vld [vmem:[#allocation3 + $0x28] sm:$0xff]
    %v323 = vld [vmem:[#allocation3 + $0x30] sm:$0xff]
    %v324 = vld [vmem:[#allocation3 + $0x38] sm:$0xff]
    %v325 = vld [vmem:[#allocation3 + $0x40] sm:$0xff]
    %v326 = vld [vmem:[#allocation3 + $0x48] sm:$0xff]
    %v327 = vld [vmem:[#allocation3 + $0x50] sm:$0xff]
    %v328 = vld [vmem:[#allocation3 + $0x58] sm:$0xff]
    %v329 = vld [vmem:[#allocation3 + $0x60] sm:$0xff]
    %v330 = vld [vmem:[#allocation3 + $0x68] sm:$0xff]
    %v331 = vld [vmem:[#allocation3 + $0x70] sm:$0xff]
    %v332 = vld [vmem:[#allocation3 + $0x78] sm:$0xff]
    %v333 = vld [vmem:[%s6] sm:$0x1]
    %v335 = vperm.slane %v333, 0
    %337 = vmatpush.msra.mxu0 %v332
    %338 = vmatpush.msra.mxu0 %v331
    %339 = vmatpush.msra.mxu0 %v330
    %340 = vmatpush.msra.mxu0 %v329
    %341 = vmatpush.msra.mxu0 %v328
    %342 = vmatpush.msra.mxu0 %v327
    %343 = vmatpush.msra.mxu0 %v326
    %344 = vmatpush.msra.mxu0 %v325
    %345 = vmatpush.msra.mxu0 %v324
    %346 = vmatpush.msra.mxu0 %v323
    %347 = vmatpush.msra.mxu0 %v322
    %348 = vmatpush.msra.mxu0 %v321
    %349 = vmatpush.msra.mxu0 %v320
    %350 = vmatpush.msra.mxu0 %v319
    %351 = vmatpush.msra.mxu0 %v318
    %352 = vmatpush.msra.mxu0 %v317
    %353 = vmatmul.f32.gmra.mxu0 %v301
    %v354 = vpop.f32.mrf.mxu0
    %v355 = vadd.f32 %v335, %v354
    %356 = vmatmul.f32.gmra.mxu0 %v302
    %v357 = vpop.f32.mrf.mxu0
    %v358 = vadd.f32 %v335, %v357
    %359 = vmatmul.f32.gmra.mxu0 %v303
    %v360 = vpop.f32.mrf.mxu0
    %v361 = vadd.f32 %v335, %v360
    %362 = vmatmul.f32.gmra.mxu0 %v304
    %v363 = vpop.f32.mrf.mxu0
    %v364 = vadd.f32 %v335, %v363
    %365 = vmatmul.f32.gmra.mxu0 %v305
    %v366 = vpop.f32.mrf.mxu0
    %v367 = vadd.f32 %v335, %v366
    %368 = vmatmul.f32.gmra.mxu0 %v306
    %v369 = vpop.f32.mrf.mxu0
    %v370 = vadd.f32 %v335, %v369
    %371 = vmatmul.f32.gmra.mxu0 %v307
    %v372 = vpop.f32.mrf.mxu0
    %v373 = vadd.f32 %v335, %v372
    %374 = vmatmul.f32.gmra.mxu0 %v308
    %v375 = vpop.f32.mrf.mxu0
    %v376 = vadd.f32 %v335, %v375
    %377 = vmatmul.f32.gmra.mxu0 %v309
    %v378 = vpop.f32.mrf.mxu0
    %v379 = vadd.f32 %v335, %v378
    %380 = vmatmul.f32.gmra.mxu0 %v310
    %v381 = vpop.f32.mrf.mxu0
    %v382 = vadd.f32 %v335, %v381
    %383 = vmatmul.f32.gmra.mxu0 %v311
    %v384 = vpop.f32.mrf.mxu0
    %v385 = vadd.f32 %v335, %v384
    %386 = vmatmul.f32.gmra.mxu0 %v312
    %v387 = vpop.f32.mrf.mxu0
    %v388 = vadd.f32 %v335, %v387
    %389 = vmatmul.f32.gmra.mxu0 %v313
    %v390 = vpop.f32.mrf.mxu0
    %v391 = vadd.f32 %v335, %v390
    %392 = vmatmul.f32.gmra.mxu0 %v314
    %v393 = vpop.f32.mrf.mxu0
    %v394 = vadd.f32 %v335, %v393
    %395 = vmatmul.f32.gmra.mxu0 %v315
    %v396 = vpop.f32.mrf.mxu0
    %v397 = vadd.f32 %v335, %v396
    %398 = vmatmul.f32.gmra.mxu0 %v316
    %v399 = vpop.f32.mrf.mxu0
    %v400 = vadd.f32 %v335, %v399
    %401 = vdwg.mxu0
    %v402 = vmax.f32 %v355, 0.0
    %v403 = vmax.f32 %v358, 0.0
    %v404 = vmax.f32 %v361, 0.0
    %v405 = vmax.f32 %v364, 0.0
    %v406 = vmax.f32 %v367, 0.0
    %v407 = vmax.f32 %v370, 0.0
    %v408 = vmax.f32 %v373, 0.0
    %v409 = vmax.f32 %v376, 0.0
    %v410 = vmax.f32 %v379, 0.0
    %v411 = vmax.f32 %v382, 0.0
    %v412 = vmax.f32 %v385, 0.0
    %v413 = vmax.f32 %v388, 0.0
    %v414 = vmax.f32 %v391, 0.0
    %v415 = vmax.f32 %v394, 0.0
    %v416 = vmax.f32 %v397, 0.0
    %v417 = vmax.f32 %v400, 0.0
    %v418 = vld [vmem:[#allocation6] sm:$0xff]
    %419 = vmatpush.xpose.msra.mxu0 %v417
    %420 = vmatpush.xpose.msra.mxu0 %v416
    %421 = vmatpush.xpose.msra.mxu0 %v415
    %422 = vmatpush.xpose.msra.mxu0 %v414
    %423 = vmatpush.xpose.msra.mxu0 %v413
    %424 = vmatpush.xpose.msra.mxu0 %v412
    %425 = vmatpush.xpose.msra.mxu0 %v411
    %426 = vmatpush.xpose.msra.mxu0 %v410
    %427 = vmatpush.xpose.msra.mxu0 %v409
    %428 = vmatpush.xpose.msra.mxu0 %v408
    %429 = vmatpush.xpose.msra.mxu0 %v407
    %430 = vmatpush.xpose.msra.mxu0 %v406
    %431 = vmatpush.xpose.msra.mxu0 %v405
    %432 = vmatpush.xpose.msra.mxu0 %v404
    %433 = vmatpush.xpose.msra.mxu0 %v403
    %434 = vmatpush.xpose.msra.mxu0 %v402
    %435 = vmatmul.f32.gmra.mxu0 %v418
    %v436 = vpop.f32.mrf.mxu0
    %v437 = vadd.f32 0.0, %v436
    %438 = vdwg.mxu0
    %v439 = vld [vmem:[#allocation2] sm:$0x1]
    %441 = vset.pattern.permute.xlu0 0
    %442 = vperm.xlu0 %441, %v439
    %v443 = vpop.permute.xlu0 %442
    %v445 = vperm.slane %v443, 0
    %v446 = vadd.f32 %v437, %v445
    %447 = vst [vmem:[#allocation8] sm:$0x1] %v446
    // Predicated region
    $region46: #{tpu_custom_call.1} parent=1 // pred_check
      _
    $region47: #{tpu_custom_call.1} parent=1 // pred_check_branch
      %449 = sbr.rel (0) target = $region49
    $region48: #{tpu_custom_call.1} parent=1 // pred_region
      %451 = vsyncadd [#allocation5], 0
      %s453 = sshll.u32 [#allocation8], 4
      %s454 = int_to_ptr.vmem [resolvable:$true] %s453
      %s455 = sshll.u32 %s9, 4
      %s456 = int_to_ptr.hbm [resolvable:$true] %s455
      %458 = dma.vmem_to_hbm [thread:$0]  %s454, 16, %s456, [#allocation5]
    $region49: #{tpu_custom_call.1} parent=1 // pred_fallthru
      _
    // Predicated region
    $region50: #{tpu_custom_call.1} parent=1 // pred_check
      _
    $region51: #{tpu_custom_call.1} parent=1 // pred_check_branch
      %460 = sbr.rel (0) target = $region53
    $region52: #{tpu_custom_call.1} parent=1 // pred_region
      %462 = dma.done [#allocation5], 16
    $region53: #{tpu_custom_call.1} parent=1 // pred_fallthru
      _
    %463 = vsyncpa [#allocation4], 1
    %464 = vsyncpa [#allocation7], 1
    %465 = vsyncpa [#allocation5], 1

</llo_original>
